<compile_context>
chip_gen: v7x
topology: tpu7x:2x2x1
jax: 0.10.0
libtpu: 0.0.40
codegen_flags: <defaults>
</compile_context>

<pallas_src>
import functools

import jax
import jax.numpy as jnp
from jax.experimental import pallas as pl
from jax.experimental.pallas import tpu as pltpu


def _cdiv(a: int, b: int) -> int:
    return (a + b - 1) // b


def _round_up(n: int, m: int) -> int:
    return ((n + m - 1) // m) * m


# ---------------------------------------------------------------------------
# Kernel
# ---------------------------------------------------------------------------
def mlp_kernel(x_ref, w1_ref, b1_ref, w2_ref, b2_ref, o_ref):
    # x_ref:  (tm, C_in)      activation row tile (f32 or bf16)
    # w1_ref: (C_in, C_in)    W1^T, grid-invariant
    # b1_ref: (1, C_in)       f32
    # w2_ref: (C_in, C_out)   W2^T, grid-invariant
    # b2_ref: (1, C_out)      f32
    # o_ref:  (tm, C_out)
    # Sub-128 feature dims are lane-padded internally by Mosaic; we do NOT
    # materialize padded copies in HBM.
    x = x_ref[...].astype(w1_ref.dtype)

    # Layer 1: MXU matmul, f32 accumulation; bias + LeakyReLU in f32 (VPU).
    h = jnp.dot(x, w1_ref[...], preferred_element_type=jnp.float32)
    h = h + b1_ref[...]
    h = jnp.where(h > 0, h, 0.01 * h)          # nn.LeakyReLU default slope

    # Layer 2: cast to weight dtype (no-op for f32, halves MXU passes for
    # bf16), accumulate in f32.
    y = jnp.dot(h.astype(w2_ref.dtype), w2_ref[...],
                preferred_element_type=jnp.float32)
    y = y + b2_ref[...]
    y = jnp.where(y > 0, y, 0.01 * y)

    o_ref[...] = y.astype(o_ref.dtype)


# ---------------------------------------------------------------------------
# Capability / hardware queries (cached, run outside any user jit)
# ---------------------------------------------------------------------------
@functools.lru_cache(maxsize=1)
def _single_buffer_weights_supported() -> bool:
    """True iff pipeline_mode=pl.Buffered(1) actually compiles on this setup."""
    try:
        spec = pl.BlockSpec((8, 128), lambda i: (0, 0),
                            pipeline_mode=pl.Buffered(1))

        def _k(x_ref, o_ref):
            o_ref[...] = x_ref[...]

        fn = pl.pallas_call(
            _k,
            out_shape=jax.ShapeDtypeStruct((8, 128), jnp.float32),
            grid=(1,),
            in_specs=[spec],
            out_specs=pl.BlockSpec((8, 128), lambda i: (0, 0)),
        )
        jax.jit(fn).lower(jnp.zeros((8, 128), jnp.float32)).compile()
        return True
    except Exception:
        return False


@functools.lru_cache(maxsize=1)
def _vmem_limit_bytes() -> int:
    """Generation-aware scoped-VMEM limit: ~3/4 of per-core VMEM capacity."""
    try:
        cap = int(pltpu.get_tpu_info().vmem_capacity_bytes)
    except Exception:
        cap = 64 * 1024 * 1024          # conservative (v7x per-TC)
    return max(16 * 1024 * 1024, min((cap * 3) // 4, 100 * 1024 * 1024))


def _pick_tm(m, c_in, c_out, act_bytes, w_bytes, vmem_limit,
             single_buffer_weights):
    """Row-tile size: large (512-2048) but within VMEM and with >=~4 grid
    steps so v7x's two TCs both get work and the pipeline has depth."""
    w_bufs = 1 if single_buffer_weights else 2
    weight_bytes = (c_in * c_in + c_in * c_out) * w_bytes * w_bufs
    weight_bytes += (c_in + c_out) * 4 * w_bufs                    # biases
    # per-row VMEM: x/out tiles double-buffered + f32 intermediates (h, y)
    per_row = (c_in + c_out) * act_bytes * 2 + (c_in + c_out) * 4
    budget = max(vmem_limit - weight_bytes - (4 << 20), 1 << 20)   # headroom
    tm_vmem = max(128, budget // per_row)

    tm_target = 2048 if act_bytes <= 2 else 1024
    tm = min(tm_target, tm_vmem)
    # keep at least ~4 grid steps when M is big enough (2-TC sharding + depth)
    tm = min(tm, max(128, _round_up(_cdiv(m, 4), 128)))
    tm = max(128, (tm // 128) * 128)
    if m <= tm:
        return m            # single full-extent block, no padding, no ragged tile
    return tm


# ---------------------------------------------------------------------------
# pallas_call builder + wrapper
# ---------------------------------------------------------------------------
def _build_mlp_call(m, c_in, c_out, tm, out_dtype, single_buffer_weights,
                    vmem_limit, cost):
    wkw = ({"pipeline_mode": pl.Buffered(1)} if single_buffer_weights else {})
    return pl.pallas_call(
        mlp_kernel,
        out_shape=jax.ShapeDtypeStruct((m, c_out), out_dtype),
        grid_spec=pltpu.PrefetchScalarGridSpec(
            num_scalar_prefetch=0,
            grid=(_cdiv(m, tm),),                       # ragged last tile OK
            in_specs=[
                pl.BlockSpec((tm, c_in), lambda i: (i, 0)),           # x tile
                pl.BlockSpec((c_in, c_in), lambda i: (0, 0), **wkw),  # W1^T
                pl.BlockSpec((1, c_in), lambda i: (0, 0), **wkw),     # b1
                pl.BlockSpec((c_in, c_out), lambda i: (0, 0), **wkw),  # W2^T
                pl.BlockSpec((1, c_out), lambda i: (0, 0), **wkw),     # b2
            ],
            out_specs=pl.BlockSpec((tm, c_out), lambda i: (i, 0)),
        ),
        compiler_params=pltpu.CompilerParams(
            dimension_semantics=("parallel",),   # shard M rows across TCs
            vmem_limit_bytes=vmem_limit,
        ),
        cost_estimate=cost,
    )
    # TODO(synk): for very large C_in (resident weights > ~16-24 MiB, earlier
    # on v7x's 64 MiB VMEM) add a K-reduction grid axis with a VMEM f32
    # accumulator (pl.when init/finalize) instead of keeping both weight
    # matrices fully resident.


def mlp_pallas(x, w1, b1, w2, b2, *, use_bf16_matmul=False,
               single_buffer_weights=True):
    """x: (..., C_in) -> (..., C_out).

    w1: (C_in, C_in), w2: (C_out, C_in) in PyTorch (out, in) convention; they
    are transposed (tiny, one-time) here.  No activation padding/slicing: the
    kernel reads x and writes the output at their native shapes.
    """
    orig_shape = x.shape
    c_in = orig_shape[-1]
    c_out = w2.shape[0]
    x2d = x.reshape(-1, c_in)
    m = x2d.shape[0]

    w_dtype = jnp.bfloat16 if use_bf16_matmul else jnp.asarray(w1).dtype
    w1_t = jnp.asarray(w1).T.astype(w_dtype)                 # (C_in, C_in)
    w2_t = jnp.asarray(w2).T.astype(w_dtype)                 # (C_in, C_out)
    b1_2d = jnp.asarray(b1).astype(jnp.float32).reshape(1, c_in)
    b2_2d = jnp.asarray(b2).astype(jnp.float32).reshape(1, c_out)

    act_bytes = jnp.dtype(x.dtype).itemsize
    w_bytes = jnp.dtype(w_dtype).itemsize
    sb = bool(single_buffer_weights) and _single_buffer_weights_supported()
    vmem_limit = _vmem_limit_bytes()
    tm = _pick_tm(m, c_in, c_out, act_bytes, w_bytes, vmem_limit, sb)

    cost = pl.CostEstimate(
        flops=2 * m * (c_in * c_in + c_in * c_out),
        transcendentals=0,
        bytes_accessed=(m * (c_in + c_out)) * act_bytes
                       + (c_in * c_in + c_in * c_out) * w_bytes
                       + (c_in + c_out) * 4,
    )

    out2d = _build_mlp_call(m, c_in, c_out, tm, x.dtype, sb, vmem_limit, cost)(
        x2d, w1_t, b1_2d, w2_t, b2_2d)
    return out2d.reshape(*orig_shape[:-1], c_out)


def init_linear_params(key, out_features, in_features, dtype=jnp.float32):
    """Deterministic init mimicking PyTorch nn.Linear: U(+-1/sqrt(fan_in))."""
    k_w, k_b = jax.random.split(key)
    bound = 1.0 / jnp.sqrt(jnp.asarray(in_features, dtype))
    w = jax.random.uniform(k_w, (out_features, in_features), dtype, -bound, bound)
    b = jax.random.uniform(k_b, (out_features,), dtype, -bound, bound)
    return w, b


if __name__ == "__main__":
    key = jax.random.PRNGKey(0)
    k_x, k_l1, k_l2 = jax.random.split(key, 3)

    B, N = 2, 8            # batch, tokens
    in_channels = 32
    out_channels = 16

    x = jax.random.normal(k_x, (B, N, in_channels), jnp.float32)
    w1, b1 = init_linear_params(k_l1, in_channels, in_channels)
    w2, b2 = init_linear_params(k_l2, out_channels, in_channels)

    def leaky(v):
        return jnp.where(v > 0, v, 0.01 * v)

    ref = leaky(leaky(x @ w1.T + b1) @ w2.T + b2)

    # f32 path: strict check against the pure-JAX reference.
    out = jax.block_until_ready(mlp_pallas(x, w1, b1, w2, b2))
    assert out.shape == (B, N, out_channels)
    assert jnp.allclose(out, ref, atol=1e-5, rtol=1e-5)

    # bf16 activations/weights with f32 accumulation (looser tolerance).
    out_bf16 = jax.block_until_ready(
        mlp_pallas(x.astype(jnp.bfloat16),
                   w1.astype(jnp.bfloat16), b1,
                   w2.astype(jnp.bfloat16), b2))
    assert out_bf16.shape == (B, N, out_channels)
    assert jnp.allclose(out_bf16.astype(jnp.float32), ref, atol=5e-2, rtol=5e-2)

    # f32 activations with bf16 MXU passes (opt-in fast path for v6e/v7x).
    out_mx = jax.block_until_ready(
        mlp_pallas(x, w1, b1, w2, b2, use_bf16_matmul=True))
    assert out_mx.shape == (B, N, out_channels)
    assert jnp.allclose(out_mx, ref, atol=5e-2, rtol=5e-2)

    print("KERNEL_OK")
</pallas_src>

<mosaic_0001>
module attributes {stable_mosaic.version = 11 : i64} {
  func.func @mlp_kernel(%arg0: i32, %arg1: memref<16x32xf32, #tpu.memory_space<vmem>>, %arg2: memref<32x32xf32, #tpu.memory_space<vmem>>, %arg3: memref<1x32xf32, #tpu.memory_space<vmem>>, %arg4: memref<32x16xf32, #tpu.memory_space<vmem>>, %arg5: memref<1x16xf32, #tpu.memory_space<vmem>>, %arg6: memref<16x16xf32, #tpu.memory_space<vmem>>) attributes {dimension_semantics = [#tpu.dimension_semantics<parallel>], iteration_bounds = array<i64: 1>, scalar_prefetch = 0 : i64, scratch_operands = 0 : i64, tpu.core_type = #tpu.core_type<tc>, window_params = [{transform_indices = @transform_0, window_bounds = array<i64: 16, 32>}, {pipeline_mode = #tpu.pipeline_mode<synchronous>, transform_indices = @transform_1, window_bounds = array<i64: 32, 32>}, {pipeline_mode = #tpu.pipeline_mode<synchronous>, transform_indices = @transform_2, window_bounds = array<i64: 1, 32>}, {pipeline_mode = #tpu.pipeline_mode<synchronous>, transform_indices = @transform_3, window_bounds = array<i64: 32, 16>}, {pipeline_mode = #tpu.pipeline_mode<synchronous>, transform_indices = @transform_4, window_bounds = array<i64: 1, 16>}, {transform_indices = @transform_5, window_bounds = array<i64: 16, 16>}]} {
    %c0 = arith.constant 0 : index
    %c0_0 = arith.constant 0 : index
    %0 = vector.load %arg1[%c0, %c0_0] : memref<16x32xf32, #tpu.memory_space<vmem>>, vector<16x32xf32>
    %c0_1 = arith.constant 0 : index
    %c0_2 = arith.constant 0 : index
    %1 = vector.load %arg2[%c0_1, %c0_2] : memref<32x32xf32, #tpu.memory_space<vmem>>, vector<32x32xf32>
    %cst = arith.constant dense<0.000000e+00> : vector<16x32xf32>
    %2 = tpu.matmul %0, %1, %cst {dimension_numbers = #tpu.dot_dimension_numbers<[1], [0], [0], [1], [0, 0, 1, 1], [], []>} : vector<16x32xf32>, vector<32x32xf32>, vector<16x32xf32> -> vector<16x32xf32>
    %c0_3 = arith.constant 0 : index
    %c0_4 = arith.constant 0 : index
    %3 = vector.load %arg3[%c0_3, %c0_4] : memref<1x32xf32, #tpu.memory_space<vmem>>, vector<1x32xf32>
    %4 = vector.broadcast %3 : vector<1x32xf32> to vector<16x32xf32>
    %5 = arith.addf %2, %4 : vector<16x32xf32>
    %cst_5 = arith.constant 0.000000e+00 : f32
    %6 = vector.broadcast %cst_5 : f32 to vector<16x32xf32>
    %7 = arith.cmpf ogt, %5, %6 : vector<16x32xf32>
    %cst_6 = arith.constant 0.00999999977 : f32
    %8 = vector.broadcast %cst_6 : f32 to vector<16x32xf32>
    %9 = arith.mulf %8, %5 : vector<16x32xf32>
    %10 = arith.select %7, %5, %9 : vector<16x32xi1>, vector<16x32xf32>
    %c0_7 = arith.constant 0 : index
    %c0_8 = arith.constant 0 : index
    %11 = vector.load %arg4[%c0_7, %c0_8] : memref<32x16xf32, #tpu.memory_space<vmem>>, vector<32x16xf32>
    %cst_9 = arith.constant dense<0.000000e+00> : vector<16x16xf32>
    %12 = tpu.matmul %10, %11, %cst_9 {dimension_numbers = #tpu.dot_dimension_numbers<[1], [0], [0], [1], [0, 0, 1, 1], [], []>} : vector<16x32xf32>, vector<32x16xf32>, vector<16x16xf32> -> vector<16x16xf32>
    %c0_10 = arith.constant 0 : index
    %c0_11 = arith.constant 0 : index
    %13 = vector.load %arg5[%c0_10, %c0_11] : memref<1x16xf32, #tpu.memory_space<vmem>>, vector<1x16xf32>
    %14 = vector.broadcast %13 : vector<1x16xf32> to vector<16x16xf32>
    %15 = arith.addf %12, %14 : vector<16x16xf32>
    %cst_12 = arith.constant 0.000000e+00 : f32
    %16 = vector.broadcast %cst_12 : f32 to vector<16x16xf32>
    %17 = arith.cmpf ogt, %15, %16 : vector<16x16xf32>
    %cst_13 = arith.constant 0.00999999977 : f32
    %18 = vector.broadcast %cst_13 : f32 to vector<16x16xf32>
    %19 = arith.mulf %18, %15 : vector<16x16xf32>
    %20 = arith.select %17, %15, %19 : vector<16x16xi1>, vector<16x16xf32>
    %c0_14 = arith.constant 0 : index
    %c0_15 = arith.constant 0 : index
    %21 = vector.load %arg6[%c0_14, %c0_15] : memref<16x16xf32, #tpu.memory_space<vmem>>, vector<16x16xf32>
    tpu.vector_store %arg6[%c0_14, %c0_15], %20 {strides = array<i32>} : memref<16x16xf32, #tpu.memory_space<vmem>>, vector<16x16xf32>,
    return
  }
  func.func @transform_0(%arg0: i32) -> (i32, i32) {
    %c0_i32 = arith.constant 0 : i32
    %c0_i32_0 = arith.constant 0 : i32
    return %arg0, %c0_i32 : i32, i32
  }
  func.func @transform_1(%arg0: i32) -> (i32, i32) {
    %c0_i32 = arith.constant 0 : i32
    %c0_i32_0 = arith.constant 0 : i32
    %c0_i32_1 = arith.constant 0 : i32
    return %c0_i32, %c0_i32_0 : i32, i32
  }
  func.func @transform_2(%arg0: i32) -> (i32, i32) {
    %c0_i32 = arith.constant 0 : i32
    %c0_i32_0 = arith.constant 0 : i32
    %c0_i32_1 = arith.constant 0 : i32
    return %c0_i32, %c0_i32_0 : i32, i32
  }
  func.func @transform_3(%arg0: i32) -> (i32, i32) {
    %c0_i32 = arith.constant 0 : i32
    %c0_i32_0 = arith.constant 0 : i32
    %c0_i32_1 = arith.constant 0 : i32
    return %c0_i32, %c0_i32_0 : i32, i32
  }
  func.func @transform_4(%arg0: i32) -> (i32, i32) {
    %c0_i32 = arith.constant 0 : i32
    %c0_i32_0 = arith.constant 0 : i32
    %c0_i32_1 = arith.constant 0 : i32
    return %c0_i32, %c0_i32_0 : i32, i32
  }
  func.func @transform_5(%arg0: i32) -> (i32, i32) {
    %c0_i32 = arith.constant 0 : i32
    %c0_i32_0 = arith.constant 0 : i32
    return %arg0, %c0_i32 : i32, i32
  }
}

</mosaic_0001>

<llo_original>
// kernel: tpu_custom_call.1
$region0: #{tpu_custom_call.1}
  #allocation0 [shape = 'u32[]', space=smem, size = 0x4, offset = 0x4, fixed_abs, tag = 'smem constant byte address 0x4 - core index']
  #allocation1 [shape = 'u32[144,128]{1,0:T(1,128)}', space=vmem, size = 0x12000, scoped, tag = 'internal scratch']
  %s0 = inlined_call_operand.vmem [shape: f32[16,32], index: 0, kind: input, shape index: {}]
  %s1 = inlined_call_operand.vmem [shape: f32[32,32], index: 1, kind: input, shape index: {}]
  %s2 = inlined_call_operand.vmem [shape: f32[1,32], index: 2, kind: input, shape index: {}]
  %s3 = inlined_call_operand.vmem [shape: f32[32,16], index: 3, kind: input, shape index: {}]
  %s4 = inlined_call_operand.vmem [shape: f32[1,16], index: 4, kind: input, shape index: {}]
  %s5 = inlined_call_operand.hbm [shape: f32[16,16], index: 5, kind: output, shape index: {}]
  %s6 = sld [smem:[#allocation0]]
  $region30: #{tpu_custom_call.1} parent=0
    _
  %s8 = ssub.s32 1, %s6
  %s9 = scalar_select 0, %s8, %s6
  $region1: #{tpu_custom_call.1} parent=0
    #allocation2 [shape = 'u8[8192]{0}', space=vmem, size = 0x2000, scoped, tag = 'output window, operand 0, single buffered']
    #allocation3 [shape = 's32[1]{0}', space=sflag, size = 0x4, scoped, tag = 'scoped memory for tpu_custom_call.1']
    %10 = vsyncpa [#allocation3], 0
    // Predicated region
    $region2: #{tpu_custom_call.1} parent=1 // pred_check
      _
    $region3: #{tpu_custom_call.1} parent=1 // pred_check_branch
      %12 = sbr.rel (0) target = $region5
    $region4: #{tpu_custom_call.1} parent=1 // pred_region
      _
    $region5: #{tpu_custom_call.1} parent=1 // pred_fallthru
      _
    // Predicated region
    $region6: #{tpu_custom_call.1} parent=1 // pred_check
      _
    $region7: #{tpu_custom_call.1} parent=1 // pred_check_branch
      %14 = sbr.rel (0) target = $region9
    $region8: #{tpu_custom_call.1} parent=1 // pred_region
      _
    $region9: #{tpu_custom_call.1} parent=1 // pred_fallthru
      _
    // Predicated region
    $region10: #{tpu_custom_call.1} parent=1 // pred_check
      _
    $region11: #{tpu_custom_call.1} parent=1 // pred_check_branch
      %16 = sbr.rel (0) target = $region13
    $region12: #{tpu_custom_call.1} parent=1 // pred_region
      _
    $region13: #{tpu_custom_call.1} parent=1 // pred_fallthru
      _
    // Predicated region
    $region14: #{tpu_custom_call.1} parent=1 // pred_check
      _
    $region15: #{tpu_custom_call.1} parent=1 // pred_check_branch
      %18 = sbr.rel (0) target = $region17
    $region16: #{tpu_custom_call.1} parent=1 // pred_region
      _
    $region17: #{tpu_custom_call.1} parent=1 // pred_fallthru
      _
    // Predicated region
    $region18: #{tpu_custom_call.1} parent=1 // pred_check
      _
    $region19: #{tpu_custom_call.1} parent=1 // pred_check_branch
      %20 = sbr.rel (0) target = $region21
    $region20: #{tpu_custom_call.1} parent=1 // pred_region
      _
    $region21: #{tpu_custom_call.1} parent=1 // pred_fallthru
      _
    %v21 = vld [vmem:[%s0] sm:$0xff]
    %v22 = vld [vmem:[%s0 + $0x8] sm:$0xff]
    %v23 = vld [vmem:[%s1] sm:$0xff]
    %v24 = vld [vmem:[%s1 + $0x8] sm:$0xff]
    %v25 = vld [vmem:[%s1 + $0x10] sm:$0xff]
    %v26 = vld [vmem:[%s1 + $0x18] sm:$0xff]
    %v27 = vld [vmem:[%s2] sm:$0x1]
    %v29 = vlaneseq
    %v30 = vshrl.u32 %v29, 7
    %v31 = vsub.s32 0, %v30
    %v32 = vrot.slane %v27, %v31
    %vm34 = vcmask 261120
    %v36 = vsel %vm34, %v21, 0
    %v39 = vsel %vm34, %v22, 0
    %41 = vmatprep.subr.mxu0 0.0
    %42 = vmatpush1.msra.mxu0 %v23
    %43 = vmatprep.subr.mxu0 0.0
    %44 = vmatpush1.msra.mxu0 %v24
    %45 = vmatprep.subr.mxu0 0.0
    %46 = vmatpush1.msra.mxu0 %v25
    %47 = vmatprep.subr.mxu0 0.0
    %48 = vmatpush1.msra.mxu0 %v26
    %49 = vmatprep.subr.mxu0 0.0
    %50 = vmatpush1.msra.mxu0 0.0
    %51 = vmatprep.subr.mxu0 0.0
    %52 = vmatpush1.msra.mxu0 0.0
    %53 = vmatprep.subr.mxu0 0.0
    %54 = vmatpush1.msra.mxu0 0.0
    %55 = vmatprep.subr.mxu0 0.0
    %56 = vmatpush1.msra.mxu0 0.0
    %57 = vmatprep.subr.mxu0 0.0
    %58 = vmatpush1.msra.mxu0 0.0
    %59 = vmatprep.subr.mxu0 0.0
    %60 = vmatpush1.msra.mxu0 0.0
    %61 = vmatprep.subr.mxu0 0.0
    %62 = vmatpush1.msra.mxu0 0.0
    %63 = vmatprep.subr.mxu0 0.0
    %64 = vmatpush1.msra.mxu0 0.0
    %65 = vmatprep.subr.mxu0 0.0
    %66 = vmatpush1.msra.mxu0 0.0
    %67 = vmatprep.subr.mxu0 0.0
    %68 = vmatpush1.msra.mxu0 0.0
    %69 = vmatprep.subr.mxu0 0.0
    %70 = vmatpush1.msra.mxu0 0.0
    %71 = vmatprep.subr.mxu0 0.0
    %72 = vmatpush1.msra.mxu0 0.0
    %73 = vmatprep.subr.mxu0 0.0
    %74 = vmatpush1.msra.mxu0 0.0
    %75 = vmatprep.subr.mxu0 0.0
    %76 = vmatpush1.msra.mxu0 0.0
    %77 = vmatprep.subr.mxu0 0.0
    %78 = vmatpush1.msra.mxu0 0.0
    %79 = vmatprep.subr.mxu0 0.0
    %80 = vmatpush1.msra.mxu0 0.0
    %81 = vmatprep.subr.mxu0 0.0
    %82 = vmatpush1.msra.mxu0 0.0
    %83 = vmatprep.subr.mxu0 0.0
    %84 = vmatpush1.msra.mxu0 0.0
    %85 = vmatprep.subr.mxu0 0.0
    %86 = vmatpush1.msra.mxu0 0.0
    %87 = vmatprep.subr.mxu0 0.0
    %88 = vmatpush1.msra.mxu0 0.0
    %89 = vmatprep.subr.mxu0 0.0
    %90 = vmatpush1.msra.mxu0 0.0
    %91 = vmatprep.subr.mxu0 0.0
    %92 = vmatpush1.msra.mxu0 0.0
    %93 = vmatprep.subr.mxu0 0.0
    %94 = vmatpush1.msra.mxu0 0.0
    %95 = vmatprep.subr.mxu0 0.0
    %96 = vmatpush1.msra.mxu0 0.0
    %97 = vmatprep.subr.mxu0 0.0
    %98 = vmatpush1.msra.mxu0 0.0
    %99 = vmatprep.subr.mxu0 0.0
    %100 = vmatpush1.msra.mxu0 0.0
    %101 = vmatprep.subr.mxu0 0.0
    %102 = vmatpush1.msra.mxu0 0.0
    %103 = vmatprep.subr.mxu0 0.0
    %104 = vmatpush1.msra.mxu0 0.0
    %105 = vmatprep.mubr.f32.mxu0 0.0
    %106 = vmatmul.mubr.f32.gmra.mrb[0].mxu0 %v36
    %v107 = vpop.f32.mrb[0].mxu0
    %v108 = vadd.f32 %v32, %v107
    %v109 = vpop.f32.mrb[0].mxu0
    %110 = vmatprep.mubr.f32.mxu0 0.0
    %111 = vmatmul.mubr.f32.gmra.mrb[0].mxu0 %v39
    %v112 = vpop.f32.mrb[0].mxu0
    %v113 = vadd.f32 %v32, %v112
    %v114 = vpop.f32.mrb[0].mxu0
    %115 = vdwg.mxu0
    %vm116 = vcmp.gt.f32.partialorder %v108, 0.0
    %vm117 = vcmp.gt.f32.partialorder %v113, 0.0
    %v118 = vmul.f32 %v108, 0.01
    %v119 = vmul.f32 %v113, 0.01
    %v120 = vsel %vm116, %v108, %v118
    %v121 = vsel %vm117, %v113, %v119
    %v122 = vld [vmem:[%s3] sm:$0xff]
    %v123 = vld [vmem:[%s3 + $0x8] sm:$0xff]
    %v124 = vld [vmem:[%s3 + $0x10] sm:$0xff]
    %v125 = vld [vmem:[%s3 + $0x18] sm:$0xff]
    %v126 = vld [vmem:[%s4] sm:$0x1]
    %v128 = vlaneseq
    %v129 = vshrl.u32 %v128, 7
    %v130 = vsub.s32 0, %v129
    %v131 = vrot.slane %v126, %v130
    %v134 = vsel %vm34, %v120, 0
    %v137 = vsel %vm34, %v121, 0
    %139 = vmatprep.subr.mxu0 0.0
    %140 = vmatpush1.msra.mxu0 %v122
    %141 = vmatprep.subr.mxu0 0.0
    %142 = vmatpush1.msra.mxu0 %v123
    %143 = vmatprep.subr.mxu0 0.0
    %144 = vmatpush1.msra.mxu0 %v124
    %145 = vmatprep.subr.mxu0 0.0
    %146 = vmatpush1.msra.mxu0 %v125
    %147 = vmatprep.subr.mxu0 0.0
    %148 = vmatpush1.msra.mxu0 0.0
    %149 = vmatprep.subr.mxu0 0.0
    %150 = vmatpush1.msra.mxu0 0.0
    %151 = vmatprep.subr.mxu0 0.0
    %152 = vmatpush1.msra.mxu0 0.0
    %153 = vmatprep.subr.mxu0 0.0
    %154 = vmatpush1.msra.mxu0 0.0
    %155 = vmatprep.subr.mxu0 0.0
    %156 = vmatpush1.msra.mxu0 0.0
    %157 = vmatprep.subr.mxu0 0.0
    %158 = vmatpush1.msra.mxu0 0.0
    %159 = vmatprep.subr.mxu0 0.0
    %160 = vmatpush1.msra.mxu0 0.0
    %161 = vmatprep.subr.mxu0 0.0
    %162 = vmatpush1.msra.mxu0 0.0
    %163 = vmatprep.subr.mxu0 0.0
    %164 = vmatpush1.msra.mxu0 0.0
    %165 = vmatprep.subr.mxu0 0.0
    %166 = vmatpush1.msra.mxu0 0.0
    %167 = vmatprep.subr.mxu0 0.0
    %168 = vmatpush1.msra.mxu0 0.0
    %169 = vmatprep.subr.mxu0 0.0
    %170 = vmatpush1.msra.mxu0 0.0
    %171 = vmatprep.subr.mxu0 0.0
    %172 = vmatpush1.msra.mxu0 0.0
    %173 = vmatprep.subr.mxu0 0.0
    %174 = vmatpush1.msra.mxu0 0.0
    %175 = vmatprep.subr.mxu0 0.0
    %176 = vmatpush1.msra.mxu0 0.0
    %177 = vmatprep.subr.mxu0 0.0
    %178 = vmatpush1.msra.mxu0 0.0
    %179 = vmatprep.subr.mxu0 0.0
    %180 = vmatpush1.msra.mxu0 0.0
    %181 = vmatprep.subr.mxu0 0.0
    %182 = vmatpush1.msra.mxu0 0.0
    %183 = vmatprep.subr.mxu0 0.0
    %184 = vmatpush1.msra.mxu0 0.0
    %185 = vmatprep.subr.mxu0 0.0
    %186 = vmatpush1.msra.mxu0 0.0
    %187 = vmatprep.subr.mxu0 0.0
    %188 = vmatpush1.msra.mxu0 0.0
    %189 = vmatprep.subr.mxu0 0.0
    %190 = vmatpush1.msra.mxu0 0.0
    %191 = vmatprep.subr.mxu0 0.0
    %192 = vmatpush1.msra.mxu0 0.0
    %193 = vmatprep.subr.mxu0 0.0
    %194 = vmatpush1.msra.mxu0 0.0
    %195 = vmatprep.subr.mxu0 0.0
    %196 = vmatpush1.msra.mxu0 0.0
    %197 = vmatprep.subr.mxu0 0.0
    %198 = vmatpush1.msra.mxu0 0.0
    %199 = vmatprep.subr.mxu0 0.0
    %200 = vmatpush1.msra.mxu0 0.0
    %201 = vmatprep.subr.mxu0 0.0
    %202 = vmatpush1.msra.mxu0 0.0
    %203 = vmatprep.mubr.f32.mxu0 0.0
    %204 = vmatmul.mubr.f32.gmra.mrb[0].mxu0 %v134
    %v205 = vpop.f32.mrb[0].mxu0
    %v206 = vadd.f32 %v131, %v205
    %v207 = vpop.f32.mrb[0].mxu0
    %208 = vmatprep.mubr.f32.mxu0 0.0
    %209 = vmatmul.mubr.f32.gmra.mrb[0].mxu0 %v137
    %v210 = vpop.f32.mrb[0].mxu0
    %v211 = vadd.f32 %v131, %v210
    %v212 = vpop.f32.mrb[0].mxu0
    %213 = vdwg.mxu0
    %vm214 = vcmp.gt.f32.partialorder %v206, 0.0
    %vm215 = vcmp.gt.f32.partialorder %v211, 0.0
    %v216 = vmul.f32 %v206, 0.01
    %v217 = vmul.f32 %v211, 0.01
    %v218 = vsel %vm214, %v206, %v216
    %v219 = vsel %vm215, %v211, %v217
    %vm220 = vcmask 130048
    %221 = vst.msk [vmem:[#allocation2] sm:$0xff] %vm220, %v218
    %222 = vst.msk [vmem:[#allocation2 + $0x8] sm:$0xff] %vm220, %v219
    // Predicated region
    $region22: #{tpu_custom_call.1} parent=1 // pred_check
      _
    $region23: #{tpu_custom_call.1} parent=1 // pred_check_branch
      %224 = sbr.rel (0) target = $region25
    $region24: #{tpu_custom_call.1} parent=1 // pred_region
      %s226 = ssub.s32 256, 256
      %227 = vsyncadd [#allocation3], %s226
      %s228 = sshll.u32 [#allocation2], 4
      %s229 = int_to_ptr.vmem [resolvable:$true] %s228
      %234 = dma.vmem_to_hbm [thread:$0]  %s229, 256, %s5, [#allocation3], 128, 128, 8
    $region25: #{tpu_custom_call.1} parent=1 // pred_fallthru
      _
    // Predicated region
    $region26: #{tpu_custom_call.1} parent=1 // pred_check
      _
    $region27: #{tpu_custom_call.1} parent=1 // pred_check_branch
      %236 = sbr.rel (0) target = $region29
    $region28: #{tpu_custom_call.1} parent=1 // pred_region
      %237 = dma.done [#allocation3], 256
    $region29: #{tpu_custom_call.1} parent=1 // pred_fallthru
      _
    %238 = vsyncpa [#allocation3], 1

</llo_original>
